<compile_context>
chip_gen: v7x
topology: tpu7x:2x2x1
jax: 0.10.0
libtpu: 0.0.40
codegen_flags: <defaults>
</compile_context>

<pallas_src>
import functools
from typing import NamedTuple, Optional

import jax
import jax.numpy as jnp
from jax.experimental import pallas as pl
from jax.experimental.pallas import tpu as pltpu


# ----------------------------------------------------------------------------
# Activations (client_activation branch of the PyTorch module).
# ----------------------------------------------------------------------------
_SELU_ALPHA = 1.6732632423543772
_SELU_SCALE = 1.0507009873554805


def _apply_activation(h, activation):
    if activation == "relu":
        return jnp.maximum(h, 0.0)
    if activation == "leaky_relu":
        return jnp.where(h >= 0.0, h, 0.01 * h)
    if activation == "elu":
        return jnp.where(h > 0.0, h, jnp.expm1(h))
    if activation == "selu":
        return _SELU_SCALE * jnp.where(h > 0.0, h, _SELU_ALPHA * jnp.expm1(h))
    if activation == "mish":
        sp = jnp.logaddexp(h, 0.0)  # overflow-safe softplus
        return h * jnp.tanh(sp)
    if activation in (None, "none", "identity"):
        return h
    raise ValueError(f"unknown activation: {activation}")


def _round_up(x, m):
    return ((x + m - 1) // m) * m


# ----------------------------------------------------------------------------
# Kernels.
# ----------------------------------------------------------------------------
def _linear_act_kernel_nk1(x_ref, w_ref, b_ref, o_ref, *, activation):
    """Single K step: no scratch round-trip, write output directly."""
    dot = jnp.dot(
        x_ref[...].astype(w_ref.dtype), w_ref[...],
        preferred_element_type=jnp.float32,
    )
    h = dot + b_ref[...]                     # (1, tn) bias broadcast over rows
    o_ref[...] = _apply_activation(h, activation).astype(o_ref.dtype)


def _linear_act_kernel(x_ref, w_ref, b_ref, o_ref, acc_ref, *, activation):
    """Multi-step K reduction with f32 VMEM accumulator (init via first dot)."""
    k = pl.program_id(2)
    dot = jnp.dot(
        x_ref[...].astype(w_ref.dtype), w_ref[...],
        preferred_element_type=jnp.float32,
    )

    @pl.when(k == 0)
    def _():
        acc_ref[...] = dot                   # init with first dot, no zero-fill

    @pl.when(k != 0)
    def _():
        acc_ref[...] += dot

    @pl.when(k == pl.num_programs(2) - 1)
    def _():
        h = acc_ref[...] + b_ref[...]
        o_ref[...] = _apply_activation(h, activation).astype(o_ref.dtype)


def _stacked_linear_act_kernel(x_ref, w_ref, b_ref, o_ref, *, activation):
    """One grid point == one client's full (Bp, Kp) @ (Kp, Np) matmul."""
    x = x_ref[0]                             # (Bp, Kp)
    w = w_ref[0]                             # (Kp, Np)
    dot = jnp.dot(x.astype(w.dtype), w, preferred_element_type=jnp.float32)
    h = dot + b_ref[0]                       # (1, Np) broadcast
    o_ref[0] = _apply_activation(h, activation).astype(o_ref.dtype)


# ----------------------------------------------------------------------------
# Parameter preparation (one-time layout plumbing, hoisted out of forward).
# ----------------------------------------------------------------------------
class ClientLinearParams(NamedTuple):
    w: jax.Array         # (Kp, Np) pre-transposed + padded weight
    b: jax.Array         # (1, Np) padded bias, f32
    in_size: int
    hidden: int
    tn: int
    tk: int


class StackedClientParams(NamedTuple):
    w: jax.Array         # (n_clients, Kp, Np)
    b: jax.Array         # (n_clients, 1, Np)
    in_size: int
    hidden: int


def prepare_client_linear(weight, bias=None, *, tn=1024, tk=1024,
                          dtype=jnp.float32) -> ClientLinearParams:
    """weight: (hidden, in_size) PyTorch layout; bias: (hidden,) or None
    (layer_no_bias branch).  Transposes to (in, hidden), pads to tile
    multiples, optionally casts the weight to bf16 for the v6e/v7x MXU."""
    hidden, in_size = weight.shape
    if bias is None:
        bias = jnp.zeros((hidden,), jnp.float32)
    tk = min(tk, _round_up(in_size, 128))
    tn = min(tn, _round_up(hidden, 128))
    Kp = _round_up(in_size, tk)
    Np = _round_up(hidden, tn)
    w_p = jnp.pad(weight.T, ((0, Kp - in_size), (0, Np - hidden))).astype(dtype)
    b_p = jnp.pad(bias.reshape(1, hidden).astype(jnp.float32),
                  ((0, 0), (0, Np - hidden)))
    return ClientLinearParams(w_p, b_p, int(in_size), int(hidden),
                              int(tn), int(tk))


def prepare_stacked_client_linear(weights, biases=None, *,
                                  dtype=jnp.float32) -> StackedClientParams:
    """weights: (n_clients, hidden, in_size); biases: (n_clients, hidden) or None."""
    n_clients, hidden, in_size = weights.shape
    if biases is None:
        biases = jnp.zeros((n_clients, hidden), jnp.float32)
    Kp = _round_up(in_size, 128)
    Np = _round_up(hidden, 128)
    w_t = jnp.transpose(weights, (0, 2, 1))          # (n, in, hidden)
    w_p = jnp.pad(w_t, ((0, 0), (0, Kp - in_size), (0, Np - hidden))).astype(dtype)
    b_p = jnp.pad(biases[:, None, :].astype(jnp.float32),
                  ((0, 0), (0, 0), (0, Np - hidden)))
    return StackedClientParams(w_p, b_p, int(in_size), int(hidden))


# ----------------------------------------------------------------------------
# Forward wrappers.
# ----------------------------------------------------------------------------
@functools.partial(jax.jit,
                   static_argnames=("hidden", "tm", "tn", "tk", "activation"))
def _linear_act_pallas(x, w_p, b_p, *, hidden, tm, tn, tk, activation):
    B, in_size = x.shape
    Kp, Np = w_p.shape

    tm = min(tm, _round_up(B, 8))
    Bp = _round_up(B, tm)
    x_p = jnp.pad(x, ((0, Bp - B), (0, Kp - in_size)))

    nm, nn, nk = Bp // tm, Np // tn, Kp // tk
    grid = (nm, nn, nk)

    w_itemsize = jnp.dtype(w_p.dtype).itemsize
    cost = pl.CostEstimate(
        flops=2 * Bp * Kp * Np,
        transcendentals=0,
        bytes_accessed=(4 * Bp * Kp * nn            # x tiles re-read per N tile
                        + w_itemsize * Kp * Np * nm  # weight re-read per M tile
                        + 4 * Np                     # bias (once per N tile, tiny)
                        + 4 * Bp * Np),              # output writeback
    )

    in_specs = [
        pl.BlockSpec((tm, tk), lambda i, j, k: (i, k)),   # x tile
        pl.BlockSpec((tk, tn), lambda i, j, k: (k, j)),   # weight tile
        pl.BlockSpec((1, tn), lambda i, j, k: (0, j)),    # bias, per-N tile only
    ]
    out_spec = pl.BlockSpec((tm, tn), lambda i, j, k: (i, j))

    if nk == 1:
        kernel = functools.partial(_linear_act_kernel_nk1, activation=activation)
        scratch = ()
    else:
        kernel = functools.partial(_linear_act_kernel, activation=activation)
        scratch = (pltpu.VMEM((tm, tn), jnp.float32),)

    out = pl.pallas_call(
        kernel,
        out_shape=jax.ShapeDtypeStruct((Bp, Np), jnp.float32),
        grid_spec=pltpu.PrefetchScalarGridSpec(
            num_scalar_prefetch=0,
            grid=grid,
            in_specs=in_specs,
            out_specs=out_spec,
            scratch_shapes=scratch,
        ),
        compiler_params=pltpu.CompilerParams(
            dimension_semantics=("parallel", "parallel", "arbitrary"),
            vmem_limit_bytes=48 * 1024 * 1024,   # ~13 MiB live at max tiles
        ),
        cost_estimate=cost,
    )(x_p, w_p, b_p)

    return out[:B, :hidden]


def client_model_forward(x, params: ClientLinearParams, *, tm=256,
                         activation="relu"):
    """x: (B, in_size) f32.  Returns activation(x @ W^T + b), (B, hidden) f32."""
    assert x.shape[-1] == params.in_size
    return _linear_act_pallas(x, params.w, params.b,
                              hidden=params.hidden, tm=tm,
                              tn=params.tn, tk=params.tk,
                              activation=activation)


@functools.partial(jax.jit, static_argnames=("hidden", "activation"))
def _stacked_forward(x, w_p, b_p, *, hidden, activation):
    n_clients, B, in_size = x.shape
    _, Kp, Np = w_p.shape
    Bp = _round_up(B, 8)
    x_p = jnp.pad(x, ((0, 0), (0, Bp - B), (0, Kp - in_size)))

    w_itemsize = jnp.dtype(w_p.dtype).itemsize
    cost = pl.CostEstimate(
        flops=2 * n_clients * Bp * Kp * Np,
        transcendentals=0,
        bytes_accessed=(4 * n_clients * Bp * Kp
                        + w_itemsize * n_clients * Kp * Np
                        + 4 * n_clients * Np
                        + 4 * n_clients * Bp * Np),
    )

    out = pl.pallas_call(
        functools.partial(_stacked_linear_act_kernel, activation=activation),
        out_shape=jax.ShapeDtypeStruct((n_clients, Bp, Np), jnp.float32),
        grid_spec=pltpu.PrefetchScalarGridSpec(
            num_scalar_prefetch=0,
            grid=(n_clients,),
            in_specs=[
                pl.BlockSpec((1, Bp, Kp), lambda c: (c, 0, 0)),
                pl.BlockSpec((1, Kp, Np), lambda c: (c, 0, 0)),
                pl.BlockSpec((1, 1, Np), lambda c: (c, 0, 0)),
            ],
            out_specs=pl.BlockSpec((1, Bp, Np), lambda c: (c, 0, 0)),
        ),
        compiler_params=pltpu.CompilerParams(
            dimension_semantics=("parallel",),
        ),
        cost_estimate=cost,
    )(x_p, w_p, b_p)

    return out[:, :B, :hidden]


def stacked_client_model_forward(x, params: StackedClientParams, *,
                                 activation="relu"):
    """x: (n_clients, B, in_size) f32.  One pallas_call for all clients;
    returns (n_clients, B, hidden) f32."""
    assert x.shape[-1] == params.in_size
    return _stacked_forward(x, params.w, params.b,
                            hidden=params.hidden, activation=activation)


# ----------------------------------------------------------------------------
# Init matching the PyTorch module + pure-JAX reference.
# ----------------------------------------------------------------------------
def init_client_model_params(key, in_size, hidden_size):
    """xavier_uniform_ on weight (shape (hidden, in)), ones on bias
    (layer_no_bias=False branch)."""
    bound = (6.0 / (in_size + hidden_size)) ** 0.5
    weight = jax.random.uniform(
        key, (hidden_size, in_size), jnp.float32, minval=-bound, maxval=bound
    )
    bias = jnp.ones((hidden_size,), jnp.float32)
    return weight, bias


def _ref_forward(x, weight, bias):
    return jnp.maximum(x @ weight.T + bias, 0.0)


if __name__ == "__main__":
    key = jax.random.PRNGKey(0)

    # --- Test 1: module-scale shapes (single grid point, scratch-free kernel).
    in_size, hidden_size, batch = 32, 16, 8
    kw, kx, key = jax.random.split(key, 3)
    weight, bias = init_client_model_params(kw, in_size, hidden_size)
    x = jax.random.normal(kx, (batch, in_size), jnp.float32)

    params = prepare_client_linear(weight, bias)               # hoisted once
    out = jax.block_until_ready(client_model_forward(x, params))
    ref = _ref_forward(x, weight, bias)
    assert out.shape == (batch, hidden_size)
    assert jnp.allclose(out, ref, atol=1e-5, rtol=1e-5)

    # --- Test 2: exercise the full (M, N, K) grid + K accumulator kernel by
    #     forcing small tiles on moderate, non-tile-multiple shapes.
    in2, hid2, b2 = 384, 256, 272
    kw2, kx2, key = jax.random.split(key, 3)
    w2, bia2 = init_client_model_params(kw2, in2, hid2)
    x2 = jax.random.normal(kx2, (b2, in2), jnp.float32)

    params2 = prepare_client_linear(w2, bia2, tn=128, tk=128)
    out2 = jax.block_until_ready(client_model_forward(x2, params2, tm=128))
    ref2 = _ref_forward(x2, w2, bia2)
    assert out2.shape == (b2, hid2)
    assert jnp.allclose(out2, ref2, atol=1e-4, rtol=1e-4)

    # --- Test 3: non-multiple shapes with default (large) tiles (pad/slice path).
    in3, hid3, b3 = 200, 70, 100
    kw3, kx3, key = jax.random.split(key, 3)
    w3, bia3 = init_client_model_params(kw3, in3, hid3)
    x3 = jax.random.normal(kx3, (b3, in3), jnp.float32)

    params3 = prepare_client_linear(w3, bia3)
    out3 = jax.block_until_ready(client_model_forward(x3, params3))
    ref3 = _ref_forward(x3, w3, bia3)
    assert out3.shape == (b3, hid3)
    assert jnp.allclose(out3, ref3, atol=1e-4, rtol=1e-4)

    # --- Test 4: optional bf16-operand path (deliberate precision change).
    in4, hid4, b4 = 256, 128, 64
    kw4, kx4, key = jax.random.split(key, 3)
    w4, bia4 = init_client_model_params(kw4, in4, hid4)
    x4 = jax.random.normal(kx4, (b4, in4), jnp.float32)

    params4 = prepare_client_linear(w4, bia4, dtype=jnp.bfloat16)
    out4 = jax.block_until_ready(client_model_forward(x4, params4))
    ref4 = _ref_forward(x4, w4, bia4)
    assert out4.shape == (b4, hid4)
    assert jnp.allclose(out4, ref4, atol=5e-2, rtol=5e-2)

    # --- Test 5: stacked clients (production VFL shapes B=8, in=32, hidden=16),
    #     one pallas_call over all clients with a parallel client grid axis.
    n_clients = 4
    kws, kxs, key = jax.random.split(key, 3)
    ws = jnp.stack([
        init_client_model_params(k, in_size, hidden_size)[0]
        for k in jax.random.split(kws, n_clients)
    ])                                                          # (n, hidden, in)
    bs = jnp.ones((n_clients, hidden_size), jnp.float32)
    xs = jax.random.normal(kxs, (n_clients, batch, in_size), jnp.float32)

    sparams = prepare_stacked_client_linear(ws, bs)
    outs = jax.block_until_ready(stacked_client_model_forward(xs, sparams))
    refs = jnp.stack([_ref_forward(xs[c], ws[c], bs[c]) for c in range(n_clients)])
    assert outs.shape == (n_clients, batch, hidden_size)
    assert jnp.allclose(outs, refs, atol=1e-4, rtol=1e-4)

    print("KERNEL_OK")
</pallas_src>

<mosaic_0001>
module attributes {stable_mosaic.version = 11 : i64} {
  func.func @_linear_act_kernel_nk1(%arg0: i32, %arg1: i32, %arg2: i32, %arg3: memref<8x128xf32, #tpu.memory_space<vmem>>, %arg4: memref<128x128xf32, #tpu.memory_space<vmem>>, %arg5: memref<1x128xf32, #tpu.memory_space<vmem>>, %arg6: memref<8x128xf32, #tpu.memory_space<vmem>>) attributes {dimension_semantics = [#tpu.dimension_semantics<parallel>, #tpu.dimension_semantics<parallel>, #tpu.dimension_semantics<arbitrary>], iteration_bounds = array<i64: 1, 1, 1>, scalar_prefetch = 0 : i64, scratch_operands = 0 : i64, tpu.core_type = #tpu.core_type<tc>, window_params = [{transform_indices = @transform_0, window_bounds = array<i64: 8, 128>}, {transform_indices = @transform_1, window_bounds = array<i64: 128, 128>}, {transform_indices = @transform_2, window_bounds = array<i64: 1, 128>}, {transform_indices = @transform_3, window_bounds = array<i64: 8, 128>}]} {
    %c0 = arith.constant 0 : index
    %c0_0 = arith.constant 0 : index
    %0 = vector.load %arg3[%c0, %c0_0] : memref<8x128xf32, #tpu.memory_space<vmem>>, vector<8x128xf32>
    %c0_1 = arith.constant 0 : index
    %c0_2 = arith.constant 0 : index
    %1 = vector.load %arg4[%c0_1, %c0_2] : memref<128x128xf32, #tpu.memory_space<vmem>>, vector<128x128xf32>
    %cst = arith.constant dense<0.000000e+00> : vector<8x128xf32>
    %2 = tpu.matmul %0, %1, %cst {dimension_numbers = #tpu.dot_dimension_numbers<[1], [0], [0], [1], [0, 0, 1, 1], [], []>} : vector<8x128xf32>, vector<128x128xf32>, vector<8x128xf32> -> vector<8x128xf32>
    %c0_3 = arith.constant 0 : index
    %c0_4 = arith.constant 0 : index
    %3 = vector.load %arg5[%c0_3, %c0_4] : memref<1x128xf32, #tpu.memory_space<vmem>>, vector<1x128xf32>
    %4 = vector.broadcast %3 : vector<1x128xf32> to vector<8x128xf32>
    %5 = arith.addf %2, %4 : vector<8x128xf32>
    %cst_5 = arith.constant 0.000000e+00 : f32
    %6 = vector.broadcast %cst_5 : f32 to vector<8x128xf32>
    %7 = arith.maximumf %5, %6 : vector<8x128xf32>
    %c0_6 = arith.constant 0 : index
    %c0_7 = arith.constant 0 : index
    %8 = vector.load %arg6[%c0_6, %c0_7] : memref<8x128xf32, #tpu.memory_space<vmem>>, vector<8x128xf32>
    tpu.vector_store %arg6[%c0_6, %c0_7], %7 {strides = array<i32>} : memref<8x128xf32, #tpu.memory_space<vmem>>, vector<8x128xf32>,
    return
  }
  func.func @transform_0(%arg0: i32, %arg1: i32, %arg2: i32) -> (i32, i32) {
    %c0_i32 = arith.constant 0 : i32
    return %arg0, %arg2 : i32, i32
  }
  func.func @transform_1(%arg0: i32, %arg1: i32, %arg2: i32) -> (i32, i32) {
    %c0_i32 = arith.constant 0 : i32
    return %arg2, %arg1 : i32, i32
  }
  func.func @transform_2(%arg0: i32, %arg1: i32, %arg2: i32) -> (i32, i32) {
    %c0_i32 = arith.constant 0 : i32
    %c0_i32_0 = arith.constant 0 : i32
    return %c0_i32, %arg1 : i32, i32
  }
  func.func @transform_3(%arg0: i32, %arg1: i32, %arg2: i32) -> (i32, i32) {
    %c0_i32 = arith.constant 0 : i32
    return %arg0, %arg1 : i32, i32
  }
}

</mosaic_0001>

<llo_original>
// kernel: _linear_act_pallas.1
$region0: #{_linear_act_pallas.1}
  #allocation0 [shape = 'u32[]', space=smem, size = 0x4, offset = 0x4, fixed_abs, tag = 'smem constant byte address 0x4 - core index']
  #allocation1 [shape = 'u32[144,128]{1,0:T(1,128)}', space=vmem, size = 0x12000, scoped, tag = 'internal scratch']
  %s0 = inlined_call_operand.vmem [shape: f32[8,128], index: 0, kind: input, shape index: {}]
  %s1 = inlined_call_operand.hbm [shape: f32[128,128], index: 1, kind: input, shape index: {}]
  %s2 = inlined_call_operand.vmem [shape: f32[1,128], index: 2, kind: input, shape index: {}]
  %s3 = inlined_call_operand.hbm [shape: f32[8,128], index: 3, kind: output, shape index: {}]
  %s4 = sld [smem:[#allocation0]]
  $region26: #{_linear_act_pallas.1} parent=0
    _
  %s6 = ssub.s32 1, %s4
  %s7 = scalar_select 0, %s6, %s4
  $region1: #{_linear_act_pallas.1} parent=0
    #allocation2 [shape = 'u8[65536]{0}', space=vmem, size = 0x10000, scoped, tag = 'input window, operand 1, single buffered']
    #allocation3 [shape = 's32[1]{0}', space=sflag, size = 0x4, scoped, tag = 'scoped memory for _linear_act_pallas.1']
    #allocation4 [shape = 's32[1]{0}', space=sflag, size = 0x4, scoped, tag = 'scoped memory for _linear_act_pallas.1']
    #allocation5 [shape = 'u8[4096]{0}', space=vmem, size = 0x1000, scoped, tag = 'output window, operand 0, single buffered']
    %8 = vsyncpa [#allocation3], 0
    %9 = vsyncpa [#allocation4], 0
    // Predicated region
    $region2: #{_linear_act_pallas.1} parent=1 // pred_check
      _
    $region3: #{_linear_act_pallas.1} parent=1 // pred_check_branch
      %11 = sbr.rel (0) target = $region5
    $region4: #{_linear_act_pallas.1} parent=1 // pred_region
      _
    $region5: #{_linear_act_pallas.1} parent=1 // pred_fallthru
      _
    // Predicated region
    $region6: #{_linear_act_pallas.1} parent=1 // pred_check
      _
    $region7: #{_linear_act_pallas.1} parent=1 // pred_check_branch
      %13 = sbr.rel (0) target = $region9
    $region8: #{_linear_act_pallas.1} parent=1 // pred_region
      %s15 = ssub.s32 2048, 2048
      %16 = vsyncadd [#allocation3], %s15
      %s17 = sshll.u32 [#allocation2], 4
      %s18 = int_to_ptr.vmem [resolvable:$true] %s17
      %23 = dma.hbm_to_vmem [thread:$0]  %s1, 2048, %s18, [#allocation3], 128, 128, 8
    $region9: #{_linear_act_pallas.1} parent=1 // pred_fallthru
      _
    // Predicated region
    $region10: #{_linear_act_pallas.1} parent=1 // pred_check
      _
    $region11: #{_linear_act_pallas.1} parent=1 // pred_check_branch
      %25 = sbr.rel (0) target = $region13
    $region12: #{_linear_act_pallas.1} parent=1 // pred_region
      _
    $region13: #{_linear_act_pallas.1} parent=1 // pred_fallthru
      _
    // Predicated region
    $region14: #{_linear_act_pallas.1} parent=1 // pred_check
      _
    $region15: #{_linear_act_pallas.1} parent=1 // pred_check_branch
      %27 = sbr.rel (0) target = $region17
    $region16: #{_linear_act_pallas.1} parent=1 // pred_region
      %28 = dma.done [#allocation3], 2048
    $region17: #{_linear_act_pallas.1} parent=1 // pred_fallthru
      _
    %v29 = vld [vmem:[%s0] sm:$0xff]
    %v30 = vld [vmem:[#allocation2] sm:$0xff]
    %v31 = vld [vmem:[#allocation2 + $0x8] sm:$0xff]
    %v32 = vld [vmem:[#allocation2 + $0x10] sm:$0xff]
    %v33 = vld [vmem:[#allocation2 + $0x18] sm:$0xff]
    %v34 = vld [vmem:[#allocation2 + $0x20] sm:$0xff]
    %v35 = vld [vmem:[#allocation2 + $0x28] sm:$0xff]
    %v36 = vld [vmem:[#allocation2 + $0x30] sm:$0xff]
    %v37 = vld [vmem:[#allocation2 + $0x38] sm:$0xff]
    %v38 = vld [vmem:[#allocation2 + $0x40] sm:$0xff]
    %v39 = vld [vmem:[#allocation2 + $0x48] sm:$0xff]
    %v40 = vld [vmem:[#allocation2 + $0x50] sm:$0xff]
    %v41 = vld [vmem:[#allocation2 + $0x58] sm:$0xff]
    %v42 = vld [vmem:[#allocation2 + $0x60] sm:$0xff]
    %v43 = vld [vmem:[#allocation2 + $0x68] sm:$0xff]
    %v44 = vld [vmem:[#allocation2 + $0x70] sm:$0xff]
    %v45 = vld [vmem:[#allocation2 + $0x78] sm:$0xff]
    %v46 = vld [vmem:[%s2] sm:$0x1]
    %v48 = vlaneseq
    %v49 = vshrl.u32 %v48, 7
    %v50 = vsub.s32 0, %v49
    %v51 = vrot.slane %v46, %v50
    %53 = vmatprep.subr.mxu0 0.0
    %54 = vmatpush1.msra.mxu0 %v30
    %55 = vmatprep.subr.mxu0 0.0
    %56 = vmatpush1.msra.mxu0 %v31
    %57 = vmatprep.subr.mxu0 0.0
    %58 = vmatpush1.msra.mxu0 %v32
    %59 = vmatprep.subr.mxu0 0.0
    %60 = vmatpush1.msra.mxu0 %v33
    %61 = vmatprep.subr.mxu0 0.0
    %62 = vmatpush1.msra.mxu0 %v34
    %63 = vmatprep.subr.mxu0 0.0
    %64 = vmatpush1.msra.mxu0 %v35
    %65 = vmatprep.subr.mxu0 0.0
    %66 = vmatpush1.msra.mxu0 %v36
    %67 = vmatprep.subr.mxu0 0.0
    %68 = vmatpush1.msra.mxu0 %v37
    %69 = vmatprep.subr.mxu0 0.0
    %70 = vmatpush1.msra.mxu0 %v38
    %71 = vmatprep.subr.mxu0 0.0
    %72 = vmatpush1.msra.mxu0 %v39
    %73 = vmatprep.subr.mxu0 0.0
    %74 = vmatpush1.msra.mxu0 %v40
    %75 = vmatprep.subr.mxu0 0.0
    %76 = vmatpush1.msra.mxu0 %v41
    %77 = vmatprep.subr.mxu0 0.0
    %78 = vmatpush1.msra.mxu0 %v42
    %79 = vmatprep.subr.mxu0 0.0
    %80 = vmatpush1.msra.mxu0 %v43
    %81 = vmatprep.subr.mxu0 0.0
    %82 = vmatpush1.msra.mxu0 %v44
    %83 = vmatprep.subr.mxu0 0.0
    %84 = vmatpush1.msra.mxu0 %v45
    %85 = vmatprep.subr.mxu0 0.0
    %86 = vmatpush1.msra.mxu0 0.0
    %87 = vmatprep.subr.mxu0 0.0
    %88 = vmatpush1.msra.mxu0 0.0
    %89 = vmatprep.subr.mxu0 0.0
    %90 = vmatpush1.msra.mxu0 0.0
    %91 = vmatprep.subr.mxu0 0.0
    %92 = vmatpush1.msra.mxu0 0.0
    %93 = vmatprep.subr.mxu0 0.0
    %94 = vmatpush1.msra.mxu0 0.0
    %95 = vmatprep.subr.mxu0 0.0
    %96 = vmatpush1.msra.mxu0 0.0
    %97 = vmatprep.subr.mxu0 0.0
    %98 = vmatpush1.msra.mxu0 0.0
    %99 = vmatprep.subr.mxu0 0.0
    %100 = vmatpush1.msra.mxu0 0.0
    %101 = vmatprep.subr.mxu0 0.0
    %102 = vmatpush1.msra.mxu0 0.0
    %103 = vmatprep.subr.mxu0 0.0
    %104 = vmatpush1.msra.mxu0 0.0
    %105 = vmatprep.subr.mxu0 0.0
    %106 = vmatpush1.msra.mxu0 0.0
    %107 = vmatprep.subr.mxu0 0.0
    %108 = vmatpush1.msra.mxu0 0.0
    %109 = vmatprep.subr.mxu0 0.0
    %110 = vmatpush1.msra.mxu0 0.0
    %111 = vmatprep.subr.mxu0 0.0
    %112 = vmatpush1.msra.mxu0 0.0
    %113 = vmatprep.subr.mxu0 0.0
    %114 = vmatpush1.msra.mxu0 0.0
    %115 = vmatprep.subr.mxu0 0.0
    %116 = vmatpush1.msra.mxu0 0.0
    %117 = vmatprep.mubr.f32.mxu0 0.0
    %118 = vmatmul.mubr.f32.gmra.mrb[0].mxu0 %v29
    %v119 = vpop.f32.mrb[0].mxu0
    %v120 = vadd.f32 %v51, %v119
    %v121 = vpop.f32.mrb[0].mxu0
    %122 = vdwg.mxu0
    %v123 = vmax.f32 %v120, 0.0
    %124 = vst [vmem:[#allocation5] sm:$0xff] %v123
    // Predicated region
    $region18: #{_linear_act_pallas.1} parent=1 // pred_check
      _
    $region19: #{_linear_act_pallas.1} parent=1 // pred_check_branch
      %126 = sbr.rel (0) target = $region21
    $region20: #{_linear_act_pallas.1} parent=1 // pred_region
      %s128 = ssub.s32 128, 128
      %129 = vsyncadd [#allocation4], %s128
      %s131 = sshll.u32 [#allocation5], 4
      %s132 = int_to_ptr.vmem [resolvable:$true] %s131
      %134 = dma.vmem_to_hbm [thread:$0]  %s132, 128, %s3, [#allocation4]
    $region21: #{_linear_act_pallas.1} parent=1 // pred_fallthru
      _
    // Predicated region
    $region22: #{_linear_act_pallas.1} parent=1 // pred_check
      _
    $region23: #{_linear_act_pallas.1} parent=1 // pred_check_branch
      %136 = sbr.rel (0) target = $region25
    $region24: #{_linear_act_pallas.1} parent=1 // pred_region
      %137 = dma.done [#allocation4], 128
    $region25: #{_linear_act_pallas.1} parent=1 // pred_fallthru
      _
    %138 = vsyncpa [#allocation3], 1
    %139 = vsyncpa [#allocation4], 1

</llo_original>
